<compile_context>
chip_gen: v6e
topology: v6e:2x2x1
jax: 0.10.0
libtpu: 0.0.40
codegen_flags: <defaults>
</compile_context>

<pallas_src>
import functools
import numpy as np

import jax
import jax.numpy as jnp
from jax.experimental import pallas as pl
from jax.experimental.pallas import tpu as pltpu


# ----------------------------------------------------------------------------
# Pallas kernel
# ----------------------------------------------------------------------------
def _rope_kernel(cos_ref, sin_ref, q_ref, k_ref, qo_ref, ko_ref, *,
                 rotary_dim: int, head_size: int,
                 num_heads: int, num_kv_heads: int, interleaved: bool):
    rd = rotary_dim
    half = rd // 2

    # Per-token cos / sign-baked sin planes, loaded once per grid step and
    # shared by the Q and K applies.  fp32 math inside, I/O dtype preserved.
    cos_t = cos_ref[...].astype(jnp.float32)          # [tile_t, rd]
    sin_t = sin_ref[...].astype(jnp.float32)          # [tile_t, rd]

    if interleaved:
        # Lane-parity mask, hoisted once per grid step (broadcasts over rows).
        lane = jax.lax.broadcasted_iota(jnp.int32, (1, rd), 1)
        even_lane = (lane % 2) == 0

    def expand_rows(plane, n):
        # [tile_t, rd] -> [tile_t*n, rd]; token-major rows (row = t*n + h).
        # Sublane repeat: cheap XLU/VPU work, hidden under the HBM-bound DMA.
        if n == 1:
            return plane
        t = plane.shape[0]
        return jnp.broadcast_to(plane[:, None, :], (t, n, rd)).reshape(t * n, rd)

    def partner(rot):
        # Element pairing each lane in the rotation FMA:
        #   out = rot * cos_full + partner(rot) * sin_signed
        if interleaved:
            # GPT-J: swap each even/odd lane pair.  Built from two 1-lane shifts;
            # wrap-around lanes are never selected by the parity mask.
            left = jnp.concatenate([rot[:, 1:], rot[:, :1]], axis=-1)     # x[d+1]
            right = jnp.concatenate([rot[:, -1:], rot[:, :-1]], axis=-1)  # x[d-1]
            return jnp.where(even_lane, left, right)
        # Neox: [x1 | x2] -> [x2 | x1].
        return jnp.concatenate([rot[:, half:], rot[:, :half]], axis=-1)

    def apply(x_ref, o_ref, nheads):
        cos_r = expand_rows(cos_t, nheads)            # [rows, rd]
        sin_r = expand_rows(sin_t, nheads)
        if rd == head_size:
            x = x_ref[...].astype(jnp.float32)
            o_ref[...] = (x * cos_r + partner(x) * sin_r).astype(o_ref.dtype)
        else:
            rot = x_ref[:, :rd].astype(jnp.float32)
            o_ref[:, :rd] = (rot * cos_r + partner(rot) * sin_r).astype(o_ref.dtype)
            # Pass-through tail: direct store in the original dtype, no concat temp.
            o_ref[:, rd:] = x_ref[:, rd:]

    apply(q_ref, qo_ref, num_heads)
    apply(k_ref, ko_ref, num_kv_heads)


def _rope_pallas(cos, sin, q2, k2, *, rotary_dim: int, head_size: int,
                 num_heads: int, num_kv_heads: int, interleaved: bool):
    """cos/sin: [T, rd] gathered planes; q2: [T*NH, HS]; k2: [T*NKV, HS]."""
    T = cos.shape[0]
    HS = head_size
    itemsize = jnp.dtype(q2.dtype).itemsize
    cs_itemsize = jnp.dtype(cos.dtype).itemsize

    # Row-tile alignment: native sublane tiling per dtype width.
    align = {4: 8, 2: 16, 1: 32}.get(itemsize, 8)

    # Honest VMEM estimate: double-buffered I/O blocks + fp32 compute temporaries.
    io_per_tok = (2 * (num_heads + num_kv_heads) * HS * itemsize
                  + 2 * rotary_dim * cs_itemsize)
    tmp_per_tok = 6 * max(num_heads, num_kv_heads) * rotary_dim * 4
    per_tok = 2 * io_per_tok + tmp_per_tok
    budget = 24 * 1024 * 1024
    tile_t = max(1, min(T, budget // per_tok, 2048))

    # Keep the grid >= 2 steps when there is enough work so ("parallel",) can
    # shard token blocks across v7x's two TensorCores (harmless on v5e/v6e).
    if T >= 2 * align:
        half_tokens = ((pl.cdiv(T, 2) + align - 1) // align) * align
        tile_t = min(tile_t, half_tokens)

    if tile_t < T:
        # Non-full row tiles must be a multiple of the sublane tiling.
        tile_t = max(align, (tile_t // align) * align)
        if tile_t >= T:
            tile_t = T

    grid = (pl.cdiv(T, tile_t),)

    kernel = functools.partial(
        _rope_kernel, rotary_dim=rotary_dim, head_size=HS,
        num_heads=num_heads, num_kv_heads=num_kv_heads, interleaved=interleaved)

    grid_spec = pltpu.PrefetchScalarGridSpec(
        num_scalar_prefetch=0,
        grid=grid,
        in_specs=[
            pl.BlockSpec((tile_t, rotary_dim), lambda i: (i, 0)),
            pl.BlockSpec((tile_t, rotary_dim), lambda i: (i, 0)),
            pl.BlockSpec((tile_t * num_heads, HS), lambda i: (i, 0)),
            pl.BlockSpec((tile_t * num_kv_heads, HS), lambda i: (i, 0)),
        ],
        out_specs=[
            pl.BlockSpec((tile_t * num_heads, HS), lambda i: (i, 0)),
            pl.BlockSpec((tile_t * num_kv_heads, HS), lambda i: (i, 0)),
        ],
    )

    q_out, k_out = pl.pallas_call(
        kernel,
        grid_spec=grid_spec,
        out_shape=(jax.ShapeDtypeStruct(q2.shape, q2.dtype),
                   jax.ShapeDtypeStruct(k2.shape, k2.dtype)),
        compiler_params=pltpu.CompilerParams(
            dimension_semantics=("parallel",),      # token blocks are independent
            vmem_limit_bytes=32 * 1024 * 1024),
    )(cos, sin, q2, k2)
    return q_out, k_out


# ----------------------------------------------------------------------------
# Layout glue for GPT-J (non-neox) when rotary_dim is not a multiple of 128
# ----------------------------------------------------------------------------
def _deinterleave(x, rotary_dim):
    rot = x[..., :rotary_dim].reshape(*x.shape[:-1], rotary_dim // 2, 2)
    return jnp.concatenate([rot[..., 0], rot[..., 1], x[..., rotary_dim:]], axis=-1)


def _reinterleave(x, rotary_dim):
    half = rotary_dim // 2
    rot = jnp.stack([x[..., :half], x[..., half:rotary_dim]], axis=-1)
    rot = rot.reshape(*x.shape[:-1], rotary_dim)
    return jnp.concatenate([rot, x[..., rotary_dim:]], axis=-1)


# ----------------------------------------------------------------------------
# Module
# ----------------------------------------------------------------------------
class RotaryEmbedding:
    """JAX/Pallas port of gllm RotaryEmbedding (original rotary positional embedding)."""

    def __init__(self, head_size: int, rotary_dim: int,
                 max_position_embeddings: int, base: float,
                 is_neox_style: bool, cache_dtype=jnp.float32) -> None:
        self.head_size = head_size
        self.rotary_dim = rotary_dim
        self.max_position_embeddings = max_position_embeddings
        self.base = base
        self.is_neox_style = is_neox_style

        inv_freq = 1.0 / (base ** (np.arange(0, rotary_dim, 2, dtype=np.float32)
                                   / rotary_dim))
        t = np.arange(max_position_embeddings, dtype=np.float32)
        freqs = np.einsum("i,j->ij", t, inv_freq)                 # [max_pos, rot/2]
        cos, sin = np.cos(freqs), np.sin(freqs)

        # Original-format buffer (matches the torch module's cos_sin_cache).
        self.cos_sin_cache = jnp.asarray(
            np.concatenate([cos, sin], axis=-1), dtype=cache_dtype)  # [max_pos, rot]

        # Baked full-width planes used by the kernel: cos_full and sign*sin,
        # stored as two dense [max_pos, rd] arrays (no padded size-2 middle dim).
        # Pass cache_dtype=jnp.bfloat16 for bf16 activations to cut cache HBM
        # traffic (kernel always computes the FMA in fp32).
        self._interleaved_kernel = (not is_neox_style) and (rotary_dim % 128 == 0)
        if self._interleaved_kernel:
            cos_full = np.repeat(cos, 2, axis=-1)                 # c0 c0 c1 c1 ...
            sign = np.tile(np.array([-1.0, 1.0], np.float32), rotary_dim // 2)
            sin_signed = np.repeat(sin, 2, axis=-1) * sign        # -s0 s0 -s1 s1 ...
        else:
            cos_full = np.concatenate([cos, cos], axis=-1)        # c | c
            sin_signed = np.concatenate([-sin, sin], axis=-1)     # -s | s
        self._cos_full = jnp.asarray(cos_full, dtype=cache_dtype)
        self._sin_signed = jnp.asarray(sin_signed, dtype=cache_dtype)

    def __call__(self, positions, query, key, offsets=None):
        q_shape, k_shape = query.shape, key.shape

        pos = positions.reshape(-1).astype(jnp.int32)
        if offsets is not None:
            pos = pos + offsets.reshape(-1).astype(jnp.int32)
        # TODO(synk): out-of-range positions are clamped (valid-but-wrong rotation)
        #             rather than UB like the CUDA op; validate upstream if needed.
        pos = jnp.clip(pos, 0, self.max_position_embeddings - 1)
        T = pos.shape[0]

        # Cheap fused gathers in the wrapper -> two dense [T, rd] planes.
        cos = jnp.take(self._cos_full, pos, axis=0)
        sin = jnp.take(self._sin_signed, pos, axis=0)

        qf = query.reshape(T, -1)
        kf = key.reshape(T, -1)
        NH = qf.shape[1] // self.head_size
        NKV = kf.shape[1] // self.head_size
        q2 = qf.reshape(T * NH, self.head_size)        # zero-cost: contiguous
        k2 = kf.reshape(T * NKV, self.head_size)

        wrapper_deint = (not self.is_neox_style) and (not self._interleaved_kernel)
        if wrapper_deint:
            q2 = _deinterleave(q2, self.rotary_dim)
            k2 = _deinterleave(k2, self.rotary_dim)

        q_out, k_out = _rope_pallas(
            cos, sin, q2, k2,
            rotary_dim=self.rotary_dim, head_size=self.head_size,
            num_heads=NH, num_kv_heads=NKV,
            interleaved=self._interleaved_kernel)

        if wrapper_deint:
            q_out = _reinterleave(q_out, self.rotary_dim)
            k_out = _reinterleave(k_out, self.rotary_dim)

        return q_out.reshape(q_shape), k_out.reshape(k_shape)


# ----------------------------------------------------------------------------
# Pure-JAX reference (mirrors the CUDA rotary_embedding op semantics)
# ----------------------------------------------------------------------------
def rope_reference(positions, x, cache, head_size, rotary_dim, is_neox_style):
    T = x.shape[0]
    H = x.shape[-1] // head_size
    x3 = x.reshape(T, H, head_size).astype(jnp.float32)
    cs = cache[positions].astype(jnp.float32)                     # [T, rot]
    half = rotary_dim // 2
    cos = cs[:, None, :half]
    sin = cs[:, None, half:]
    rot = x3[..., :rotary_dim]
    if is_neox_style:
        x1, x2 = rot[..., :half], rot[..., half:]
        out_rot = jnp.concatenate([x1 * cos - x2 * sin, x2 * cos + x1 * sin], -1)
    else:
        x1, x2 = rot[..., 0::2], rot[..., 1::2]
        o1, o2 = x1 * cos - x2 * sin, x2 * cos + x1 * sin
        out_rot = jnp.stack([o1, o2], axis=-1).reshape(T, H, rotary_dim)
    out = jnp.concatenate([out_rot, x3[..., rotary_dim:]], axis=-1)
    return out.reshape(x.shape).astype(x.dtype)


# ----------------------------------------------------------------------------
if __name__ == "__main__":
    max_pos = 64
    base = 10000.0
    num_tokens = 8
    num_heads = 4
    num_kv_heads = 2

    # (head_size, rotary_dim): partial rotary, full small rotary, and a
    # 128-wide config that exercises the in-kernel (lane-parity) interleave path.
    configs = [(32, 16), (32, 32), (128, 128)]

    ok = True
    key0 = jax.random.PRNGKey(0)
    for head_size, rotary_dim in configs:
        kq, kk, kp, key0 = jax.random.split(key0, 4)
        query = jax.random.normal(kq, (num_tokens, num_heads * head_size), jnp.float32)
        key_t = jax.random.normal(kk, (num_tokens, num_kv_heads * head_size), jnp.float32)
        positions = jax.random.randint(kp, (num_tokens,), 0, max_pos, jnp.int32)

        for neox in (True, False):
            rope = RotaryEmbedding(head_size, rotary_dim, max_pos, base, neox)
            q_out, k_out = rope(positions, query, key_t)
            jax.block_until_ready((q_out, k_out))

            q_ref = rope_reference(positions, query, rope.cos_sin_cache,
                                   head_size, rotary_dim, neox)
            k_ref = rope_reference(positions, key_t, rope.cos_sin_cache,
                                   head_size, rotary_dim, neox)
            ok &= bool(jnp.allclose(q_out, q_ref, atol=1e-5, rtol=1e-5))
            ok &= bool(jnp.allclose(k_out, k_ref, atol=1e-5, rtol=1e-5))

    if ok:
        print("KERNEL_OK")
    else:
        print("KERNEL_MISMATCH")
</pallas_src>

<mosaic_0001>
module attributes {stable_mosaic.version = 11 : i64} {
  func.func @_rope_kernel(%arg0: i32, %arg1: memref<8x16xf32, #tpu.memory_space<vmem>>, %arg2: memref<8x16xf32, #tpu.memory_space<vmem>>, %arg3: memref<32x32xf32, #tpu.memory_space<vmem>>, %arg4: memref<16x32xf32, #tpu.memory_space<vmem>>, %arg5: memref<32x32xf32, #tpu.memory_space<vmem>>, %arg6: memref<16x32xf32, #tpu.memory_space<vmem>>) attributes {dimension_semantics = [#tpu.dimension_semantics<parallel>], iteration_bounds = array<i64: 1>, scalar_prefetch = 0 : i64, scratch_operands = 0 : i64, tpu.core_type = #tpu.core_type<tc>, window_params = [{transform_indices = @transform_0, window_bounds = array<i64: 8, 16>}, {transform_indices = @transform_1, window_bounds = array<i64: 8, 16>}, {transform_indices = @transform_2, window_bounds = array<i64: 32, 32>}, {transform_indices = @transform_3, window_bounds = array<i64: 16, 32>}, {transform_indices = @transform_4, window_bounds = array<i64: 32, 32>}, {transform_indices = @transform_5, window_bounds = array<i64: 16, 32>}]} {
    %c0 = arith.constant 0 : index
    %c0_0 = arith.constant 0 : index
    %0 = vector.load %arg1[%c0, %c0_0] : memref<8x16xf32, #tpu.memory_space<vmem>>, vector<8x16xf32>
    %c0_1 = arith.constant 0 : index
    %c0_2 = arith.constant 0 : index
    %1 = vector.load %arg2[%c0_1, %c0_2] : memref<8x16xf32, #tpu.memory_space<vmem>>, vector<8x16xf32>
    %2 = vector.shape_cast %0 : vector<8x16xf32> to vector<8x1x16xf32>
    %3 = vector.shape_cast %2 : vector<8x1x16xf32> to vector<8x1x16xf32>
    %4 = vector.broadcast %3 : vector<8x1x16xf32> to vector<8x4x16xf32>
    %5 = vector.shape_cast %4 : vector<8x4x16xf32> to vector<32x16xf32>
    %6 = vector.shape_cast %1 : vector<8x16xf32> to vector<8x1x16xf32>
    %7 = vector.shape_cast %6 : vector<8x1x16xf32> to vector<8x1x16xf32>
    %8 = vector.broadcast %7 : vector<8x1x16xf32> to vector<8x4x16xf32>
    %9 = vector.shape_cast %8 : vector<8x4x16xf32> to vector<32x16xf32>
    %c0_3 = arith.constant 0 : index
    %c0_4 = arith.constant 0 : index
    %10 = vector.load %arg3[%c0_3, %c0_4] : memref<32x32xf32, #tpu.memory_space<vmem>>, vector<32x16xf32>
    %11 = arith.mulf %10, %5 : vector<32x16xf32>
    %12 = vector.extract_strided_slice %10 {offsets = [0, 8], sizes = [32, 8], strides = [1, 1]} : vector<32x16xf32> to vector<32x8xf32>
    %13 = vector.extract_strided_slice %10 {offsets = [0, 0], sizes = [32, 8], strides = [1, 1]} : vector<32x16xf32> to vector<32x8xf32>
    %14 = tpu.concatenate %12, %13 in 1 : vector<32x8xf32>, vector<32x8xf32> -> vector<32x16xf32>
    %15 = arith.mulf %14, %9 : vector<32x16xf32>
    %16 = arith.addf %11, %15 : vector<32x16xf32>
    %c0_5 = arith.constant 0 : index
    %c0_6 = arith.constant 0 : index
    %17 = vector.load %arg5[%c0_5, %c0_6] : memref<32x32xf32, #tpu.memory_space<vmem>>, vector<32x16xf32>
    tpu.vector_store %arg5[%c0_5, %c0_6], %16 {strides = array<i32>} : memref<32x32xf32, #tpu.memory_space<vmem>>, vector<32x16xf32>,
    %c0_7 = arith.constant 0 : index
    %c16 = arith.constant 16 : index
    %18 = vector.load %arg3[%c0_7, %c16] : memref<32x32xf32, #tpu.memory_space<vmem>>, vector<32x16xf32>
    %c0_8 = arith.constant 0 : index
    %c16_9 = arith.constant 16 : index
    %19 = vector.load %arg5[%c0_8, %c16_9] : memref<32x32xf32, #tpu.memory_space<vmem>>, vector<32x16xf32>
    tpu.vector_store %arg5[%c0_8, %c16_9], %18 {strides = array<i32>} : memref<32x32xf32, #tpu.memory_space<vmem>>, vector<32x16xf32>,
    %20 = vector.shape_cast %0 : vector<8x16xf32> to vector<8x1x16xf32>
    %21 = vector.shape_cast %20 : vector<8x1x16xf32> to vector<8x1x16xf32>
    %22 = vector.broadcast %21 : vector<8x1x16xf32> to vector<8x2x16xf32>
    %23 = vector.shape_cast %22 : vector<8x2x16xf32> to vector<16x16xf32>
    %24 = vector.shape_cast %1 : vector<8x16xf32> to vector<8x1x16xf32>
    %25 = vector.shape_cast %24 : vector<8x1x16xf32> to vector<8x1x16xf32>
    %26 = vector.broadcast %25 : vector<8x1x16xf32> to vector<8x2x16xf32>
    %27 = vector.shape_cast %26 : vector<8x2x16xf32> to vector<16x16xf32>
    %c0_10 = arith.constant 0 : index
    %c0_11 = arith.constant 0 : index
    %28 = vector.load %arg4[%c0_10, %c0_11] : memref<16x32xf32, #tpu.memory_space<vmem>>, vector<16x16xf32>
    %29 = arith.mulf %28, %23 : vector<16x16xf32>
    %30 = vector.extract_strided_slice %28 {offsets = [0, 8], sizes = [16, 8], strides = [1, 1]} : vector<16x16xf32> to vector<16x8xf32>
    %31 = vector.extract_strided_slice %28 {offsets = [0, 0], sizes = [16, 8], strides = [1, 1]} : vector<16x16xf32> to vector<16x8xf32>
    %32 = tpu.concatenate %30, %31 in 1 : vector<16x8xf32>, vector<16x8xf32> -> vector<16x16xf32>
    %33 = arith.mulf %32, %27 : vector<16x16xf32>
    %34 = arith.addf %29, %33 : vector<16x16xf32>
    %c0_12 = arith.constant 0 : index
    %c0_13 = arith.constant 0 : index
    %35 = vector.load %arg6[%c0_12, %c0_13] : memref<16x32xf32, #tpu.memory_space<vmem>>, vector<16x16xf32>
    tpu.vector_store %arg6[%c0_12, %c0_13], %34 {strides = array<i32>} : memref<16x32xf32, #tpu.memory_space<vmem>>, vector<16x16xf32>,
    %c0_14 = arith.constant 0 : index
    %c16_15 = arith.constant 16 : index
    %36 = vector.load %arg4[%c0_14, %c16_15] : memref<16x32xf32, #tpu.memory_space<vmem>>, vector<16x16xf32>
    %c0_16 = arith.constant 0 : index
    %c16_17 = arith.constant 16 : index
    %37 = vector.load %arg6[%c0_16, %c16_17] : memref<16x32xf32, #tpu.memory_space<vmem>>, vector<16x16xf32>
    tpu.vector_store %arg6[%c0_16, %c16_17], %36 {strides = array<i32>} : memref<16x32xf32, #tpu.memory_space<vmem>>, vector<16x16xf32>,
    return
  }
  func.func @transform_0(%arg0: i32) -> (i32, i32) {
    %c0_i32 = arith.constant 0 : i32
    %c0_i32_0 = arith.constant 0 : i32
    return %arg0, %c0_i32 : i32, i32
  }
  func.func @transform_1(%arg0: i32) -> (i32, i32) {
    %c0_i32 = arith.constant 0 : i32
    %c0_i32_0 = arith.constant 0 : i32
    return %arg0, %c0_i32 : i32, i32
  }
  func.func @transform_2(%arg0: i32) -> (i32, i32) {
    %c0_i32 = arith.constant 0 : i32
    %c0_i32_0 = arith.constant 0 : i32
    return %arg0, %c0_i32 : i32, i32
  }
  func.func @transform_3(%arg0: i32) -> (i32, i32) {
    %c0_i32 = arith.constant 0 : i32
    %c0_i32_0 = arith.constant 0 : i32
    return %arg0, %c0_i32 : i32, i32
  }
  func.func @transform_4(%arg0: i32) -> (i32, i32) {
    %c0_i32 = arith.constant 0 : i32
    %c0_i32_0 = arith.constant 0 : i32
    return %arg0, %c0_i32 : i32, i32
  }
  func.func @transform_5(%arg0: i32) -> (i32, i32) {
    %c0_i32 = arith.constant 0 : i32
    %c0_i32_0 = arith.constant 0 : i32
    return %arg0, %c0_i32 : i32, i32
  }
}

</mosaic_0001>

<llo_original>
// kernel: tpu_custom_call.1
$region0: #{tpu_custom_call.1}
  #allocation0 [shape = 'u32[]', space=smem, size = 0x4, offset = 0x4, fixed_abs, tag = 'smem constant byte address 0x4 - core index']
  #allocation1 [shape = 'u32[144,128]{1,0:T(1,128)}', space=vmem, size = 0x12000, scoped, tag = 'internal scratch']
  %s0 = inlined_call_operand.hbm [shape: f32[8,16], index: 0, kind: input, shape index: {}]
  %s1 = inlined_call_operand.hbm [shape: f32[8,16], index: 1, kind: input, shape index: {}]
  %s2 = inlined_call_operand.hbm [shape: f32[32,32], index: 2, kind: input, shape index: {}]
  %s3 = inlined_call_operand.hbm [shape: f32[16,32], index: 3, kind: input, shape index: {}]
  %s4 = inlined_call_operand.hbm [shape: f32[32,32], index: 4, kind: output, shape index: {0}]
  %s5 = inlined_call_operand.hbm [shape: f32[16,32], index: 5, kind: output, shape index: {1}]
  %6 = xla_tuple %s4, %s5
  %s7 = sld [smem:[#allocation0]]
  $region50: #{tpu_custom_call.1} parent=0
    _
  %s9 = ssub.s32 1, %s7
  %s10 = scalar_select 0, %s9, %s7
  $region1: #{tpu_custom_call.1} parent=0
    #allocation2 [shape = 'u8[4096]{0}', space=vmem, size = 0x1000, scoped, tag = 'input window, operand 0, single buffered']
    #allocation3 [shape = 's32[1]{0}', space=sflag, size = 0x4, scoped, tag = 'scoped memory for tpu_custom_call.1']
    #allocation4 [shape = 's32[1]{0}', space=sflag, size = 0x4, scoped, tag = 'scoped memory for tpu_custom_call.1']
    #allocation5 [shape = 'u8[4096]{0}', space=vmem, size = 0x1000, scoped, tag = 'input window, operand 1, single buffered']
    #allocation6 [shape = 's32[1]{0}', space=sflag, size = 0x4, scoped, tag = 'scoped memory for tpu_custom_call.1']
    #allocation7 [shape = 'u8[16384]{0}', space=vmem, size = 0x4000, scoped, tag = 'input window, operand 2, single buffered']
    #allocation8 [shape = 'u8[8192]{0}', space=vmem, size = 0x2000, scoped, tag = 'input window, operand 3, single buffered']
    #allocation9 [shape = 's32[1]{0}', space=sflag, size = 0x4, scoped, tag = 'scoped memory for tpu_custom_call.1']
    #allocation10 [shape = 'u8[16384]{0}', space=vmem, size = 0x4000, scoped, tag = 'output window, operand 0, single buffered']
    #allocation11 [shape = 'u8[8192]{0}', space=vmem, size = 0x2000, scoped, tag = 'output window, operand 1, single buffered']
    #allocation12 [shape = 's32[1]{0}', space=sflag, size = 0x4, scoped, tag = 'scoped memory for tpu_custom_call.1']
    %11 = vsyncpa [#allocation3], 0
    %12 = vsyncpa [#allocation6], 0
    %13 = vsyncpa [#allocation9], 0
    %14 = vsyncpa [#allocation4], 0
    %15 = vsyncpa [#allocation12], 0
    // Predicated region
    $region2: #{tpu_custom_call.1} parent=1 // pred_check
      _
    $region3: #{tpu_custom_call.1} parent=1 // pred_check_branch
      %17 = sbr.rel (0) target = $region5
    $region4: #{tpu_custom_call.1} parent=1 // pred_region
      %s19 = ssub.s32 128, 128
      %20 = vsyncadd [#allocation3], %s19
      %s22 = sshll.u32 [#allocation2], 4
      %s23 = int_to_ptr.vmem [resolvable:$true] %s22
      %25 = dma.hbm_to_vmem [thread:$0]  %s0, 128, %s23, [#allocation3]
    $region5: #{tpu_custom_call.1} parent=1 // pred_fallthru
      _
    // Predicated region
    $region6: #{tpu_custom_call.1} parent=1 // pred_check
      _
    $region7: #{tpu_custom_call.1} parent=1 // pred_check_branch
      %27 = sbr.rel (0) target = $region9
    $region8: #{tpu_custom_call.1} parent=1 // pred_region
      %s29 = ssub.s32 128, 128
      %30 = vsyncadd [#allocation6], %s29
      %s32 = sshll.u32 [#allocation5], 4
      %s33 = int_to_ptr.vmem [resolvable:$true] %s32
      %35 = dma.hbm_to_vmem [thread:$0]  %s1, 128, %s33, [#allocation6]
    $region9: #{tpu_custom_call.1} parent=1 // pred_fallthru
      _
    // Predicated region
    $region10: #{tpu_custom_call.1} parent=1 // pred_check
      _
    $region11: #{tpu_custom_call.1} parent=1 // pred_check_branch
      %37 = sbr.rel (0) target = $region13
    $region12: #{tpu_custom_call.1} parent=1 // pred_region
      %s39 = ssub.s32 512, 512
      %40 = vsyncadd [#allocation6], %s39
      %s41 = sshll.u32 [#allocation7], 4
      %s42 = int_to_ptr.vmem [resolvable:$true] %s41
      %47 = dma.hbm_to_vmem [thread:$0]  %s2, 512, %s42, [#allocation6], 128, 128, 8
    $region13: #{tpu_custom_call.1} parent=1 // pred_fallthru
      _
    // Predicated region
    $region14: #{tpu_custom_call.1} parent=1 // pred_check
      _
    $region15: #{tpu_custom_call.1} parent=1 // pred_check_branch
      %49 = sbr.rel (0) target = $region17
    $region16: #{tpu_custom_call.1} parent=1 // pred_region
      %s51 = ssub.s32 256, 256
      %52 = vsyncadd [#allocation9], %s51
      %s53 = sshll.u32 [#allocation8], 4
      %s54 = int_to_ptr.vmem [resolvable:$true] %s53
      %59 = dma.hbm_to_vmem [thread:$0]  %s3, 256, %s54, [#allocation9], 128, 128, 8
    $region17: #{tpu_custom_call.1} parent=1 // pred_fallthru
      _
    // Predicated region
    $region18: #{tpu_custom_call.1} parent=1 // pred_check
      _
    $region19: #{tpu_custom_call.1} parent=1 // pred_check_branch
      %61 = sbr.rel (0) target = $region21
    $region20: #{tpu_custom_call.1} parent=1 // pred_region
      %62 = dma.done [#allocation3], 128
    $region21: #{tpu_custom_call.1} parent=1 // pred_fallthru
      _
    // Predicated region
    $region22: #{tpu_custom_call.1} parent=1 // pred_check
      _
    $region23: #{tpu_custom_call.1} parent=1 // pred_check_branch
      %64 = sbr.rel (0) target = $region25
    $region24: #{tpu_custom_call.1} parent=1 // pred_region
      %65 = dma.done [#allocation6], 128
    $region25: #{tpu_custom_call.1} parent=1 // pred_fallthru
      _
    // Predicated region
    $region26: #{tpu_custom_call.1} parent=1 // pred_check
      _
    $region27: #{tpu_custom_call.1} parent=1 // pred_check_branch
      %67 = sbr.rel (0) target = $region29
    $region28: #{tpu_custom_call.1} parent=1 // pred_region
      %68 = dma.done [#allocation6], 512
    $region29: #{tpu_custom_call.1} parent=1 // pred_fallthru
      _
    // Predicated region
    $region30: #{tpu_custom_call.1} parent=1 // pred_check
      _
    $region31: #{tpu_custom_call.1} parent=1 // pred_check_branch
      %70 = sbr.rel (0) target = $region33
    $region32: #{tpu_custom_call.1} parent=1 // pred_region
      %71 = dma.done [#allocation9], 256
    $region33: #{tpu_custom_call.1} parent=1 // pred_fallthru
      _
    %v72 = vld [vmem:[#allocation2] sm:$0xff]
    %v73 = vld [vmem:[#allocation5] sm:$0xff]
    %v75 = vcombine.high %v72, %v72
    %v77 = vunpack.c.l.s4 1966171168
    %v78 = vunpack.c.0.s8 %v77
    %v79 = vlaneseq
    %v80 = vshrl.u32 %v79, 7
    %v81 = vsub.s32 %v78, %v80
    %v82 = vrot.slane %v72, %v81
    %v84 = vunpack.c.l.s4 1966171168
    %v85 = vunpack.c.0.s8 %v84
    %v86 = vlaneseq
    %v87 = vshrl.u32 %v86, 7
    %v88 = vsub.s32 %v85, %v87
    %v89 = vrot.slane %v75, %v88
    %v90 = vcombine.high %v82, %v82
    %v91 = vcombine.high %v89, %v89
    %v93 = vunpack.c.l.s4 1966171168
    %v94 = vunpack.c.0.s8 %v93
    %v95 = vlaneseq
    %v96 = vshrl.u32 %v95, 7
    %v97 = vsub.s32 %v94, %v96
    %v98 = vrot.slane %v82, %v97
    %v100 = vunpack.c.l.s4 1966171168
    %v101 = vunpack.c.0.s8 %v100
    %v102 = vlaneseq
    %v103 = vshrl.u32 %v102, 7
    %v104 = vsub.s32 %v101, %v103
    %v105 = vrot.slane %v89, %v104
    %v107 = vunpack.c.l.s4 1966171168
    %v108 = vunpack.c.0.s8 %v107
    %v109 = vlaneseq
    %v110 = vshrl.u32 %v109, 7
    %v111 = vsub.s32 %v108, %v110
    %v112 = vrot.slane %v90, %v111
    %v114 = vunpack.c.l.s4 1966171168
    %v115 = vunpack.c.0.s8 %v114
    %v116 = vlaneseq
    %v117 = vshrl.u32 %v116, 7
    %v118 = vsub.s32 %v115, %v117
    %v119 = vrot.slane %v91, %v118
    %v120 = vcombine.high %v98, %v98
    %v121 = vcombine.high %v105, %v105
    %v122 = vcombine.high %v112, %v112
    %v123 = vcombine.high %v119, %v119
    %v124 = vlaneseq
    %v125 = vshrl.u32 %v124, 7
    %v126 = vsub.s32 0, %v125
    %v127 = vrot.slane %v98, %v126
    %v128 = vlaneseq
    %v129 = vshrl.u32 %v128, 7
    %v130 = vsub.s32 0, %v129
    %v131 = vrot.slane %v112, %v130
    %v132 = vlaneseq
    %v133 = vshrl.u32 %v132, 7
    %v134 = vsub.s32 0, %v133
    %v135 = vrot.slane %v120, %v134
    %v136 = vlaneseq
    %v137 = vshrl.u32 %v136, 7
    %v138 = vsub.s32 0, %v137
    %v139 = vrot.slane %v122, %v138
    %v140 = vlaneseq
    %v141 = vshrl.u32 %v140, 7
    %v142 = vsub.s32 0, %v141
    %v143 = vrot.slane %v105, %v142
    %v144 = vlaneseq
    %v145 = vshrl.u32 %v144, 7
    %v146 = vsub.s32 0, %v145
    %v147 = vrot.slane %v119, %v146
    %v148 = vlaneseq
    %v149 = vshrl.u32 %v148, 7
    %v150 = vsub.s32 0, %v149
    %v151 = vrot.slane %v121, %v150
    %v152 = vlaneseq
    %v153 = vshrl.u32 %v152, 7
    %v154 = vsub.s32 0, %v153
    %v155 = vrot.slane %v123, %v154
    %v157 = vcombine.high %v73, %v73
    %v159 = vunpack.c.l.s4 1966171168
    %v160 = vunpack.c.0.s8 %v159
    %v161 = vlaneseq
    %v162 = vshrl.u32 %v161, 7
    %v163 = vsub.s32 %v160, %v162
    %v164 = vrot.slane %v73, %v163
    %v166 = vunpack.c.l.s4 1966171168
    %v167 = vunpack.c.0.s8 %v166
    %v168 = vlaneseq
    %v169 = vshrl.u32 %v168, 7
    %v170 = vsub.s32 %v167, %v169
    %v171 = vrot.slane %v157, %v170
    %v172 = vcombine.high %v164, %v164
    %v173 = vcombine.high %v171, %v171
    %v175 = vunpack.c.l.s4 1966171168
    %v176 = vunpack.c.0.s8 %v175
    %v177 = vlaneseq
    %v178 = vshrl.u32 %v177, 7
    %v179 = vsub.s32 %v176, %v178
    %v180 = vrot.slane %v164, %v179
    %v182 = vunpack.c.l.s4 1966171168
    %v183 = vunpack.c.0.s8 %v182
    %v184 = vlaneseq
    %v185 = vshrl.u32 %v184, 7
    %v186 = vsub.s32 %v183, %v185
    %v187 = vrot.slane %v171, %v186
    %v189 = vunpack.c.l.s4 1966171168
    %v190 = vunpack.c.0.s8 %v189
    %v191 = vlaneseq
    %v192 = vshrl.u32 %v191, 7
    %v193 = vsub.s32 %v190, %v192
    %v194 = vrot.slane %v172, %v193
    %v196 = vunpack.c.l.s4 1966171168
    %v197 = vunpack.c.0.s8 %v196
    %v198 = vlaneseq
    %v199 = vshrl.u32 %v198, 7
    %v200 = vsub.s32 %v197, %v199
    %v201 = vrot.slane %v173, %v200
    %v202 = vcombine.high %v180, %v180
    %v203 = vcombine.high %v187, %v187
    %v204 = vcombine.high %v194, %v194
    %v205 = vcombine.high %v201, %v201
    %v206 = vlaneseq
    %v207 = vshrl.u32 %v206, 7
    %v208 = vsub.s32 0, %v207
    %v209 = vrot.slane %v180, %v208
    %v210 = vlaneseq
    %v211 = vshrl.u32 %v210, 7
    %v212 = vsub.s32 0, %v211
    %v213 = vrot.slane %v194, %v212
    %v214 = vlaneseq
    %v215 = vshrl.u32 %v214, 7
    %v216 = vsub.s32 0, %v215
    %v217 = vrot.slane %v202, %v216
    %v218 = vlaneseq
    %v219 = vshrl.u32 %v218, 7
    %v220 = vsub.s32 0, %v219
    %v221 = vrot.slane %v204, %v220
    %v222 = vlaneseq
    %v223 = vshrl.u32 %v222, 7
    %v224 = vsub.s32 0, %v223
    %v225 = vrot.slane %v187, %v224
    %v226 = vlaneseq
    %v227 = vshrl.u32 %v226, 7
    %v228 = vsub.s32 0, %v227
    %v229 = vrot.slane %v201, %v228
    %v230 = vlaneseq
    %v231 = vshrl.u32 %v230, 7
    %v232 = vsub.s32 0, %v231
    %v233 = vrot.slane %v203, %v232
    %v234 = vlaneseq
    %v235 = vshrl.u32 %v234, 7
    %v236 = vsub.s32 0, %v235
    %v237 = vrot.slane %v205, %v236
    %v238 = vld [vmem:[#allocation7] sm:$0xff]
    %v239 = vld [vmem:[#allocation7 + $0x8] sm:$0xff]
    %v240 = vld [vmem:[#allocation7 + $0x10] sm:$0xff]
    %v241 = vld [vmem:[#allocation7 + $0x18] sm:$0xff]
    %v242 = vcombine.low %v127, %v131
    %v243 = vcombine.low %v135, %v139
    %v244 = vcombine.low %v143, %v147
    %v245 = vcombine.low %v151, %v155
    %v250 = vmul.f32 %v238, %v242
    %v251 = vmul.f32 %v239, %v243
    %v252 = vmul.f32 %v240, %v244
    %v253 = vmul.f32 %v241, %v245
    %258 = vrot.lane.b32.xlu0 %v238, 120
    %v259 = vpop.permute.xlu0 %258
    %260 = vrot.lane.b32.xlu0 %v239, 120
    %v261 = vpop.permute.xlu0 %260
    %262 = vrot.lane.b32.xlu0 %v240, 120
    %v263 = vpop.permute.xlu0 %262
    %264 = vrot.lane.b32.xlu0 %v241, 120
    %v265 = vpop.permute.xlu0 %264
    %270 = vrot.lane.b32.xlu0 %v238, 8
    %v271 = vpop.permute.xlu0 %270
    %272 = vrot.lane.b32.xlu0 %v239, 8
    %v273 = vpop.permute.xlu0 %272
    %274 = vrot.lane.b32.xlu0 %v240, 8
    %v275 = vpop.permute.xlu0 %274
    %276 = vrot.lane.b32.xlu0 %v241, 8
    %v277 = vpop.permute.xlu0 %276
    %vm282 = vcmask 64512
    %v283 = vsel %vm282, %v259, %v271
    %v284 = vsel %vm282, %v261, %v273
    %v285 = vsel %vm282, %v263, %v275
    %v286 = vsel %vm282, %v265, %v277
    %v287 = vcombine.low %v209, %v213
    %v288 = vcombine.low %v217, %v221
    %v289 = vcombine.low %v225, %v229
    %v290 = vcombine.low %v233, %v237
    %v295 = vmul.f32 %v283, %v287
    %v296 = vmul.f32 %v284, %v288
    %v297 = vmul.f32 %v285, %v289
    %v298 = vmul.f32 %v286, %v290
    %v299 = vadd.f32 %v250, %v295
    %v300 = vadd.f32 %v251, %v296
    %v301 = vadd.f32 %v252, %v297
    %v302 = vadd.f32 %v253, %v298
    %vm303 = vcmask 130048
    %304 = vst.msk [vmem:[#allocation10] sm:$0xff] %vm303, %v299
    %305 = vst.msk [vmem:[#allocation10 + $0x8] sm:$0xff] %vm303, %v300
    %306 = vst.msk [vmem:[#allocation10 + $0x10] sm:$0xff] %vm303, %v301
    %307 = vst.msk [vmem:[#allocation10 + $0x18] sm:$0xff] %vm303, %v302
    %v308 = vld [vmem:[#allocation7] sm:$0xff]
    %v309 = vld [vmem:[#allocation7 + $0x8] sm:$0xff]
    %v310 = vld [vmem:[#allocation7 + $0x10] sm:$0xff]
    %v311 = vld [vmem:[#allocation7 + $0x18] sm:$0xff]
    %vm312 = vcmask 261248
    %313 = vst.msk [vmem:[#allocation10] sm:$0xff] %vm312, %v308
    %314 = vst.msk [vmem:[#allocation10 + $0x8] sm:$0xff] %vm312, %v309
    %315 = vst.msk [vmem:[#allocation10 + $0x10] sm:$0xff] %vm312, %v310
    %316 = vst.msk [vmem:[#allocation10 + $0x18] sm:$0xff] %vm312, %v311
    %v317 = vld [vmem:[#allocation8] sm:$0xff]
    %v318 = vld [vmem:[#allocation8 + $0x8] sm:$0xff]
    %v320 = vunpack.c.l.s4 1983009808
    %v321 = vunpack.c.0.s8 %v320
    %v322 = vlaneseq
    %v323 = vshrl.u32 %v322, 7
    %v324 = vsub.s32 %v321, %v323
    %v325 = vrot.slane %v242, %v324
    %v327 = vunpack.c.l.s4 1983009808
    %v328 = vunpack.c.0.s8 %v327
    %v329 = vlaneseq
    %v330 = vshrl.u32 %v329, 7
    %v331 = vsub.s32 %v328, %v330
    %v332 = vrot.slane %v243, %v331
    %v333 = vcombine.low %v325, %v332
    %v335 = vunpack.c.l.s4 1983009808
    %v336 = vunpack.c.0.s8 %v335
    %v337 = vlaneseq
    %v338 = vshrl.u32 %v337, 7
    %v339 = vsub.s32 %v336, %v338
    %v340 = vrot.slane %v244, %v339
    %v342 = vunpack.c.l.s4 1983009808
    %v343 = vunpack.c.0.s8 %v342
    %v344 = vlaneseq
    %v345 = vshrl.u32 %v344, 7
    %v346 = vsub.s32 %v343, %v345
    %v347 = vrot.slane %v245, %v346
    %v348 = vcombine.low %v340, %v347
    %v351 = vmul.f32 %v317, %v333
    %v352 = vmul.f32 %v318, %v348
    %355 = vrot.lane.b32.xlu0 %v317, 120
    %v356 = vpop.permute.xlu0 %355
    %357 = vrot.lane.b32.xlu0 %v318, 120
    %v358 = vpop.permute.xlu0 %357
    %361 = vrot.lane.b32.xlu0 %v317, 8
    %v362 = vpop.permute.xlu0 %361
    %363 = vrot.lane.b32.xlu0 %v318, 8
    %v364 = vpop.permute.xlu0 %363
    %v367 = vsel %vm282, %v356, %v362
    %v368 = vsel %vm282, %v358, %v364
    %v370 = vunpack.c.l.s4 1983009808
    %v371 = vunpack.c.0.s8 %v370
    %v372 = vlaneseq
    %v373 = vshrl.u32 %v372, 7
    %v374 = vsub.s32 %v371, %v373
    %v375 = vrot.slane %v287, %v374
    %v377 = vunpack.c.l.s4 1983009808
    %v378 = vunpack.c.0.s8 %v377
    %v379 = vlaneseq
    %v380 = vshrl.u32 %v379, 7
    %v381 = vsub.s32 %v378, %v380
    %v382 = vrot.slane %v288, %v381
    %v383 = vcombine.low %v375, %v382
    %v385 = vunpack.c.l.s4 1983009808
    %v386 = vunpack.c.0.s8 %v385
    %v387 = vlaneseq
    %v388 = vshrl.u32 %v387, 7
    %v389 = vsub.s32 %v386, %v388
    %v390 = vrot.slane %v289, %v389
    %v392 = vunpack.c.l.s4 1983009808
    %v393 = vunpack.c.0.s8 %v392
    %v394 = vlaneseq
    %v395 = vshrl.u32 %v394, 7
    %v396 = vsub.s32 %v393, %v395
    %v397 = vrot.slane %v290, %v396
    %v398 = vcombine.low %v390, %v397
    %v401 = vmul.f32 %v367, %v383
    %v402 = vmul.f32 %v368, %v398
    %v403 = vadd.f32 %v351, %v401
    %v404 = vadd.f32 %v352, %v402
    %405 = vst.msk [vmem:[#allocation11] sm:$0xff] %vm303, %v403
    %406 = vst.msk [vmem:[#allocation11 + $0x8] sm:$0xff] %vm303, %v404
    %v407 = vld [vmem:[#allocation8] sm:$0xff]
    %v408 = vld [vmem:[#allocation8 + $0x8] sm:$0xff]
    %409 = vst.msk [vmem:[#allocation11] sm:$0xff] %vm312, %v407
    %410 = vst.msk [vmem:[#allocation11 + $0x8] sm:$0xff] %vm312, %v408
    // Predicated region
    $region34: #{tpu_custom_call.1} parent=1 // pred_check
      _
    $region35: #{tpu_custom_call.1} parent=1 // pred_check_branch
      %412 = sbr.rel (0) target = $region37
    $region36: #{tpu_custom_call.1} parent=1 // pred_region
      %s414 = ssub.s32 512, 512
      %415 = vsyncadd [#allocation4], %s414
      %s416 = sshll.u32 [#allocation10], 4
      %s417 = int_to_ptr.vmem [resolvable:$true] %s416
      %422 = dma.vmem_to_hbm [thread:$0]  %s417, 512, %s4, [#allocation4], 128, 128, 8
    $region37: #{tpu_custom_call.1} parent=1 // pred_fallthru
      _
    // Predicated region
    $region38: #{tpu_custom_call.1} parent=1 // pred_check
      _
    $region39: #{tpu_custom_call.1} parent=1 // pred_check_branch
      %424 = sbr.rel (0) target = $region41
    $region40: #{tpu_custom_call.1} parent=1 // pred_region
      %s426 = ssub.s32 256, 256
      %427 = vsyncadd [#allocation12], %s426
      %s428 = sshll.u32 [#allocation11], 4
      %s429 = int_to_ptr.vmem [resolvable:$true] %s428
      %434 = dma.vmem_to_hbm [thread:$0]  %s429, 256, %s5, [#allocation12], 128, 128, 8
    $region41: #{tpu_custom_call.1} parent=1 // pred_fallthru
      _
    // Predicated region
    $region42: #{tpu_custom_call.1} parent=1 // pred_check
      _
    $region43: #{tpu_custom_call.1} parent=1 // pred_check_branch
      %436 = sbr.rel (0) target = $region45
    $region44: #{tpu_custom_call.1} parent=1 // pred_region
      %437 = dma.done [#allocation4], 512
    $region45: #{tpu_custom_call.1} parent=1 // pred_fallthru
      _
    // Predicated region
    $region46: #{tpu_custom_call.1} parent=1 // pred_check
      _
    $region47: #{tpu_custom_call.1} parent=1 // pred_check_branch
      %439 = sbr.rel (0) target = $region49
    $region48: #{tpu_custom_call.1} parent=1 // pred_region
      %440 = dma.done [#allocation12], 256
    $region49: #{tpu_custom_call.1} parent=1 // pred_fallthru
      _
    %441 = vsyncpa [#allocation3], 1
    %442 = vsyncpa [#allocation6], 1
    %443 = vsyncpa [#allocation9], 1
    %444 = vsyncpa [#allocation4], 1
    %445 = vsyncpa [#allocation12], 1

</llo_original>
